<compile_context>
chip_gen: v5e
topology: v5e:2x2
jax: 0.10.0
libtpu: 0.0.40
codegen_flags: <defaults>
</compile_context>

<pallas_src>
import jax
import jax.numpy as jnp
from jax.experimental import pallas as pl
from jax.experimental.pallas import tpu as pltpu

_LANE = 128


def _sigmoid(z):
    # sigmoid(z) == 0.5 * tanh(0.5 * z) + 0.5 exactly; single EUP op.
    return 0.5 * jnp.tanh(0.5 * z) + 0.5


def _ae_kernel(qT_ref,
               w1e_ref, b1e_ref, w2e_ref, b2e_ref, w3e_ref, b3e_ref,
               w1d_ref, b1d_ref, w2d_ref, b2d_ref, w3d_ref, b3d_ref,
               out_ref):
    """Feature-major fused forward + forward-mode Jacobians.

    qT_ref : (2, TB)    input q, transposed (batch on lanes)
    w*_ref : (out, in)  transposed Linear weights (VMEM-resident)
    b*_ref : (out, 1)   biases
    out_ref: (12, TB)   lane-dense slab:
             rows 0:2  theta             rows 6:8   q_hat
             rows 2:4  d theta / d q0    rows 8:10  d q_hat / d theta0
             rows 4:6  d theta / d q1    rows 10:12 d q_hat / d theta1
    """

    def mlp_with_jac(xT, w1, b1, w2, b2, w3, b3):
        # ---- layer 1 (K=2): VPU outer-product FMAs, no MXU ----
        z1 = w1[:, 0:1] * xT[0:1, :] + w1[:, 1:2] * xT[1:2, :] + b1   # (32, TB)
        h1 = _sigmoid(z1)
        s1 = h1 * (1.0 - h1)
        d1_0 = s1 * w1[:, 0:1]            # d h1 / d x0
        d1_1 = s1 * w1[:, 1:2]            # d h1 / d x1

        # ---- layer 2: three (32,32)@(32,TB) dots against resident weight ----
        h2 = _sigmoid(jnp.dot(w2, h1, preferred_element_type=jnp.float32) + b2)
        s2 = h2 * (1.0 - h2)
        d2_0 = s2 * jnp.dot(w2, d1_0, preferred_element_type=jnp.float32)
        d2_1 = s2 * jnp.dot(w2, d1_1, preferred_element_type=jnp.float32)

        # ---- layer 3: (2,32)@(32,TB) dots (lane-dense output) ----
        y = jnp.dot(w3, h2, preferred_element_type=jnp.float32) + b3   # (2, TB)
        dy_0 = jnp.dot(w3, d2_0, preferred_element_type=jnp.float32)
        dy_1 = jnp.dot(w3, d2_1, preferred_element_type=jnp.float32)
        return y, dy_0, dy_1

    x = qT_ref[...]                                                   # (2, TB)

    # encoder: theta = enc(q), columns of J_h
    theta, dth0, dth1 = mlp_with_jac(
        x, w1e_ref[...], b1e_ref[...], w2e_ref[...], b2e_ref[...],
        w3e_ref[...], b3e_ref[...])
    # decoder evaluated at theta (matches the PyTorch forward)
    q_hat, dqh0, dqh1 = mlp_with_jac(
        theta, w1d_ref[...], b1d_ref[...], w2d_ref[...], b2d_ref[...],
        w3d_ref[...], b3d_ref[...])

    # Sublane-aligned block writes only; no lane shuffles, single lane-dense tile.
    out_ref[0:2, :] = theta
    out_ref[2:4, :] = dth0
    out_ref[4:6, :] = dth1
    out_ref[6:8, :] = q_hat
    out_ref[8:10, :] = dqh0
    out_ref[10:12, :] = dqh1


def _pick_tile(B, block_b):
    """Batch tile: multiple of 128 lanes; keep >=2 grid steps when possible
    so both v7x TensorCores get work (v5e/v6e: just maximizes the tile)."""
    b128 = ((max(B, 1) + _LANE - 1) // _LANE) * _LANE
    tb = max(_LANE, (min(block_b, b128) // _LANE) * _LANE)
    if b128 // tb < 2 and b128 >= 2 * _LANE:
        tb = max(_LANE, (b128 // 2 // _LANE) * _LANE)
    return tb


def _transpose_params(params):
    """(in,out) weights / (1,out) biases -> (out,in) weights / (out,1) biases."""
    (w1e, b1e, w2e, b2e, w3e, b3e,
     w1d, b1d, w2d, b2d, w3d, b3d) = params
    out = []
    for w, b in ((w1e, b1e), (w2e, b2e), (w3e, b3e),
                 (w1d, b1d), (w2d, b2d), (w3d, b3d)):
        out.append(jnp.asarray(w, jnp.float32).T)
        out.append(jnp.asarray(b, jnp.float32).reshape(-1, 1))
    return tuple(out)


def autoencoder_double_forward(q, params, block_b=1024):
    """Returns (theta, J_h, q_hat, J_h_dec, J_h_ana) matching the PyTorch module."""
    B = q.shape[0]
    TB = _pick_tile(B, block_b)
    Bp = ((B + TB - 1) // TB) * TB

    qT = jnp.asarray(q, jnp.float32).T                        # (2, B)
    if Bp != B:
        qT = jnp.pad(qT, ((0, 0), (0, Bp - B)))

    paramsT = _transpose_params(params)
    weight_specs = [pl.BlockSpec(p.shape, lambda i: (0, 0)) for p in paramsT]

    out = pl.pallas_call(
        _ae_kernel,
        out_shape=jax.ShapeDtypeStruct((12, Bp), jnp.float32),
        grid=(Bp // TB,),
        in_specs=[pl.BlockSpec((2, TB), lambda i: (0, i))] + weight_specs,
        out_specs=pl.BlockSpec((12, TB), lambda i: (0, i)),
        compiler_params=pltpu.CompilerParams(
            dimension_semantics=("parallel",)),
    )(qT, *paramsT)

    out = out[:, :B]                                          # (12, B)
    theta = out[0:2].T                                        # (B, 2)
    q_hat = out[6:8].T                                        # (B, 2)
    # rows 2:6 / 8:12 are laid out k-major: (k, o, B) -> (B, o, k)
    J_h = jnp.transpose(out[2:6].reshape(2, 2, B), (2, 1, 0))
    J_h_dec = jnp.transpose(out[8:12].reshape(2, 2, B), (2, 1, 0))

    # TODO(synk): J_h_ana depends on the external transforms.analytic_theta_0/1
    # (double-pendulum analytic coordinate map) which is not part of this module;
    # emit a correctly-shaped placeholder instead of faking the physics.
    J_h_ana = jnp.zeros((B, 2, 2), dtype=jnp.float32)

    return theta, J_h, q_hat, J_h_dec, J_h_ana


def init_params(key):
    """Deterministic init matching PyTorch nn.Linear default U(-1/sqrt(fan_in), +).
    Weights stored as (in_features, out_features), biases as (1, out_features)."""
    def linear(k, fan_in, fan_out):
        kw, kb = jax.random.split(k)
        bound = 1.0 / jnp.sqrt(fan_in)
        w = jax.random.uniform(kw, (fan_in, fan_out), jnp.float32, -bound, bound)
        b = jax.random.uniform(kb, (1, fan_out), jnp.float32, -bound, bound)
        return w, b

    keys = jax.random.split(key, 6)
    w1e, b1e = linear(keys[0], 2, 32)
    w2e, b2e = linear(keys[1], 32, 32)
    w3e, b3e = linear(keys[2], 32, 2)
    w1d, b1d = linear(keys[3], 2, 32)
    w2d, b2d = linear(keys[4], 32, 32)
    w3d, b3d = linear(keys[5], 32, 2)
    return (w1e, b1e, w2e, b2e, w3e, b3e, w1d, b1d, w2d, b2d, w3d, b3d)


def _ref_forward(q, params):
    """Pure-JAX reference (autodiff) for correctness check."""
    (w1e, b1e, w2e, b2e, w3e, b3e,
     w1d, b1d, w2d, b2d, w3d, b3d) = params

    def enc1(v):
        h1 = jax.nn.sigmoid(v @ w1e + b1e[0])
        h2 = jax.nn.sigmoid(h1 @ w2e + b2e[0])
        return h2 @ w3e + b3e[0]

    def dec1(v):
        h1 = jax.nn.sigmoid(v @ w1d + b1d[0])
        h2 = jax.nn.sigmoid(h1 @ w2d + b2d[0])
        return h2 @ w3d + b3d[0]

    theta = jax.vmap(enc1)(q)
    J_h = jax.vmap(jax.jacfwd(enc1))(q)
    q_hat = jax.vmap(dec1)(theta)
    J_h_dec = jax.vmap(jax.jacfwd(dec1))(theta)
    return theta, J_h, q_hat, J_h_dec


def _check(q, params, block_b=1024):
    theta, J_h, q_hat, J_h_dec, J_h_ana = autoencoder_double_forward(
        q, params, block_b=block_b)
    jax.block_until_ready((theta, J_h, q_hat, J_h_dec, J_h_ana))
    theta_r, J_h_r, q_hat_r, J_h_dec_r = _ref_forward(q, params)
    assert jnp.allclose(theta, theta_r, atol=1e-5), "theta mismatch"
    assert jnp.allclose(J_h, J_h_r, atol=1e-5), "J_h mismatch"
    assert jnp.allclose(q_hat, q_hat_r, atol=1e-5), "q_hat mismatch"
    assert jnp.allclose(J_h_dec, J_h_dec_r, atol=1e-5), "J_h_dec mismatch"
    assert J_h_ana.shape == (q.shape[0], 2, 2)


if __name__ == "__main__":
    key = jax.random.PRNGKey(0)
    kq, kq2, kp = jax.random.split(key, 3)
    params = init_params(kp)

    # small demo batch (single 128-lane tile, exercises the padding path)
    q_small = jax.random.normal(kq, (8, 2), dtype=jnp.float32)
    _check(q_small, params)

    # multi-tile grid + tail padding path (B=300 -> TB=128, 3 grid steps)
    q_big = jax.random.normal(kq2, (300, 2), dtype=jnp.float32)
    _check(q_big, params)

    print("KERNEL_OK")
</pallas_src>

<mosaic_0001>
module attributes {stable_mosaic.version = 11 : i64} {
  func.func @_ae_kernel(%arg0: i32, %arg1: memref<2x128xf32, #tpu.memory_space<vmem>>, %arg2: memref<32x2xf32, #tpu.memory_space<vmem>>, %arg3: memref<32x1xf32, #tpu.memory_space<vmem>>, %arg4: memref<32x32xf32, #tpu.memory_space<vmem>>, %arg5: memref<32x1xf32, #tpu.memory_space<vmem>>, %arg6: memref<2x32xf32, #tpu.memory_space<vmem>>, %arg7: memref<2x1xf32, #tpu.memory_space<vmem>>, %arg8: memref<32x2xf32, #tpu.memory_space<vmem>>, %arg9: memref<32x1xf32, #tpu.memory_space<vmem>>, %arg10: memref<32x32xf32, #tpu.memory_space<vmem>>, %arg11: memref<32x1xf32, #tpu.memory_space<vmem>>, %arg12: memref<2x32xf32, #tpu.memory_space<vmem>>, %arg13: memref<2x1xf32, #tpu.memory_space<vmem>>, %arg14: memref<12x128xf32, #tpu.memory_space<vmem>>) attributes {dimension_semantics = [#tpu.dimension_semantics<parallel>], iteration_bounds = array<i64: 1>, scalar_prefetch = 0 : i64, scratch_operands = 0 : i64, tpu.core_type = #tpu.core_type<tc>, window_params = [{transform_indices = @transform_0, window_bounds = array<i64: 2, 128>}, {pipeline_mode = #tpu.pipeline_mode<synchronous>, transform_indices = @transform_1, window_bounds = array<i64: 32, 2>}, {pipeline_mode = #tpu.pipeline_mode<synchronous>, transform_indices = @transform_2, window_bounds = array<i64: 32, 1>}, {pipeline_mode = #tpu.pipeline_mode<synchronous>, transform_indices = @transform_3, window_bounds = array<i64: 32, 32>}, {pipeline_mode = #tpu.pipeline_mode<synchronous>, transform_indices = @transform_4, window_bounds = array<i64: 32, 1>}, {pipeline_mode = #tpu.pipeline_mode<synchronous>, transform_indices = @transform_5, window_bounds = array<i64: 2, 32>}, {pipeline_mode = #tpu.pipeline_mode<synchronous>, transform_indices = @transform_6, window_bounds = array<i64: 2, 1>}, {pipeline_mode = #tpu.pipeline_mode<synchronous>, transform_indices = @transform_7, window_bounds = array<i64: 32, 2>}, {pipeline_mode = #tpu.pipeline_mode<synchronous>, transform_indices = @transform_8, window_bounds = array<i64: 32, 1>}, {pipeline_mode = #tpu.pipeline_mode<synchronous>, transform_indices = @transform_9, window_bounds = array<i64: 32, 32>}, {pipeline_mode = #tpu.pipeline_mode<synchronous>, transform_indices = @transform_10, window_bounds = array<i64: 32, 1>}, {pipeline_mode = #tpu.pipeline_mode<synchronous>, transform_indices = @transform_11, window_bounds = array<i64: 2, 32>}, {pipeline_mode = #tpu.pipeline_mode<synchronous>, transform_indices = @transform_12, window_bounds = array<i64: 2, 1>}, {transform_indices = @transform_13, window_bounds = array<i64: 12, 128>}]} {
    %c0 = arith.constant 0 : index
    %c0_0 = arith.constant 0 : index
    %0 = vector.load %arg1[%c0, %c0_0] : memref<2x128xf32, #tpu.memory_space<vmem>>, vector<2x128xf32>
    %c0_1 = arith.constant 0 : index
    %c0_2 = arith.constant 0 : index
    %1 = vector.load %arg2[%c0_1, %c0_2] : memref<32x2xf32, #tpu.memory_space<vmem>>, vector<32x2xf32>
    %c0_3 = arith.constant 0 : index
    %c0_4 = arith.constant 0 : index
    %2 = vector.load %arg3[%c0_3, %c0_4] : memref<32x1xf32, #tpu.memory_space<vmem>>, vector<32x1xf32>
    %c0_5 = arith.constant 0 : index
    %c0_6 = arith.constant 0 : index
    %3 = vector.load %arg4[%c0_5, %c0_6] : memref<32x32xf32, #tpu.memory_space<vmem>>, vector<32x32xf32>
    %c0_7 = arith.constant 0 : index
    %c0_8 = arith.constant 0 : index
    %4 = vector.load %arg5[%c0_7, %c0_8] : memref<32x1xf32, #tpu.memory_space<vmem>>, vector<32x1xf32>
    %c0_9 = arith.constant 0 : index
    %c0_10 = arith.constant 0 : index
    %5 = vector.load %arg6[%c0_9, %c0_10] : memref<2x32xf32, #tpu.memory_space<vmem>>, vector<2x32xf32>
    %c0_11 = arith.constant 0 : index
    %c0_12 = arith.constant 0 : index
    %6 = vector.load %arg7[%c0_11, %c0_12] : memref<2x1xf32, #tpu.memory_space<vmem>>, vector<2x1xf32>
    %7 = vector.extract_strided_slice %1 {offsets = [0, 0], sizes = [32, 1], strides = [1, 1]} : vector<32x2xf32> to vector<32x1xf32>
    %8 = vector.extract_strided_slice %0 {offsets = [0, 0], sizes = [1, 128], strides = [1, 1]} : vector<2x128xf32> to vector<1x128xf32>
    %9 = vector.broadcast %7 : vector<32x1xf32> to vector<32x128xf32>
    %10 = vector.broadcast %8 : vector<1x128xf32> to vector<32x128xf32>
    %11 = arith.mulf %9, %10 : vector<32x128xf32>
    %12 = vector.extract_strided_slice %1 {offsets = [0, 1], sizes = [32, 1], strides = [1, 1]} : vector<32x2xf32> to vector<32x1xf32>
    %13 = vector.extract_strided_slice %0 {offsets = [1, 0], sizes = [1, 128], strides = [1, 1]} : vector<2x128xf32> to vector<1x128xf32>
    %14 = vector.broadcast %12 : vector<32x1xf32> to vector<32x128xf32>
    %15 = vector.broadcast %13 : vector<1x128xf32> to vector<32x128xf32>
    %16 = arith.mulf %14, %15 : vector<32x128xf32>
    %17 = arith.addf %11, %16 : vector<32x128xf32>
    %18 = vector.broadcast %2 : vector<32x1xf32> to vector<32x128xf32>
    %19 = arith.addf %17, %18 : vector<32x128xf32>
    %cst = arith.constant 5.000000e-01 : f32
    %20 = vector.broadcast %cst : f32 to vector<32x128xf32>
    %21 = arith.mulf %20, %19 : vector<32x128xf32>
    %22 = math.tanh %21 : vector<32x128xf32>
    %cst_13 = arith.constant 5.000000e-01 : f32
    %23 = vector.broadcast %cst_13 : f32 to vector<32x128xf32>
    %24 = arith.mulf %23, %22 : vector<32x128xf32>
    %cst_14 = arith.constant 5.000000e-01 : f32
    %25 = vector.broadcast %cst_14 : f32 to vector<32x128xf32>
    %26 = arith.addf %24, %25 : vector<32x128xf32>
    %cst_15 = arith.constant 1.000000e+00 : f32
    %27 = vector.broadcast %cst_15 : f32 to vector<32x128xf32>
    %28 = arith.subf %27, %26 : vector<32x128xf32>
    %29 = arith.mulf %26, %28 : vector<32x128xf32>
    %30 = vector.extract_strided_slice %1 {offsets = [0, 0], sizes = [32, 1], strides = [1, 1]} : vector<32x2xf32> to vector<32x1xf32>
    %31 = vector.broadcast %30 : vector<32x1xf32> to vector<32x128xf32>
    %32 = arith.mulf %29, %31 : vector<32x128xf32>
    %33 = vector.extract_strided_slice %1 {offsets = [0, 1], sizes = [32, 1], strides = [1, 1]} : vector<32x2xf32> to vector<32x1xf32>
    %34 = vector.broadcast %33 : vector<32x1xf32> to vector<32x128xf32>
    %35 = arith.mulf %29, %34 : vector<32x128xf32>
    %cst_16 = arith.constant dense<0.000000e+00> : vector<32x128xf32>
    %36 = tpu.matmul %3, %26, %cst_16 {dimension_numbers = #tpu.dot_dimension_numbers<[1], [0], [0], [1], [0, 0, 1, 1], [], []>} : vector<32x32xf32>, vector<32x128xf32>, vector<32x128xf32> -> vector<32x128xf32>
    %37 = vector.broadcast %4 : vector<32x1xf32> to vector<32x128xf32>
    %38 = arith.addf %36, %37 : vector<32x128xf32>
    %cst_17 = arith.constant 5.000000e-01 : f32
    %39 = vector.broadcast %cst_17 : f32 to vector<32x128xf32>
    %40 = arith.mulf %39, %38 : vector<32x128xf32>
    %41 = math.tanh %40 : vector<32x128xf32>
    %cst_18 = arith.constant 5.000000e-01 : f32
    %42 = vector.broadcast %cst_18 : f32 to vector<32x128xf32>
    %43 = arith.mulf %42, %41 : vector<32x128xf32>
    %cst_19 = arith.constant 5.000000e-01 : f32
    %44 = vector.broadcast %cst_19 : f32 to vector<32x128xf32>
    %45 = arith.addf %43, %44 : vector<32x128xf32>
    %cst_20 = arith.constant 1.000000e+00 : f32
    %46 = vector.broadcast %cst_20 : f32 to vector<32x128xf32>
    %47 = arith.subf %46, %45 : vector<32x128xf32>
    %48 = arith.mulf %45, %47 : vector<32x128xf32>
    %cst_21 = arith.constant dense<0.000000e+00> : vector<32x128xf32>
    %49 = tpu.matmul %3, %32, %cst_21 {dimension_numbers = #tpu.dot_dimension_numbers<[1], [0], [0], [1], [0, 0, 1, 1], [], []>} : vector<32x32xf32>, vector<32x128xf32>, vector<32x128xf32> -> vector<32x128xf32>
    %50 = arith.mulf %48, %49 : vector<32x128xf32>
    %cst_22 = arith.constant dense<0.000000e+00> : vector<32x128xf32>
    %51 = tpu.matmul %3, %35, %cst_22 {dimension_numbers = #tpu.dot_dimension_numbers<[1], [0], [0], [1], [0, 0, 1, 1], [], []>} : vector<32x32xf32>, vector<32x128xf32>, vector<32x128xf32> -> vector<32x128xf32>
    %52 = arith.mulf %48, %51 : vector<32x128xf32>
    %cst_23 = arith.constant dense<0.000000e+00> : vector<2x128xf32>
    %53 = tpu.matmul %5, %45, %cst_23 {dimension_numbers = #tpu.dot_dimension_numbers<[1], [0], [0], [1], [0, 0, 1, 1], [], []>} : vector<2x32xf32>, vector<32x128xf32>, vector<2x128xf32> -> vector<2x128xf32>
    %54 = vector.broadcast %6 : vector<2x1xf32> to vector<2x128xf32>
    %55 = arith.addf %53, %54 : vector<2x128xf32>
    %cst_24 = arith.constant dense<0.000000e+00> : vector<2x128xf32>
    %56 = tpu.matmul %5, %50, %cst_24 {dimension_numbers = #tpu.dot_dimension_numbers<[1], [0], [0], [1], [0, 0, 1, 1], [], []>} : vector<2x32xf32>, vector<32x128xf32>, vector<2x128xf32> -> vector<2x128xf32>
    %cst_25 = arith.constant dense<0.000000e+00> : vector<2x128xf32>
    %57 = tpu.matmul %5, %52, %cst_25 {dimension_numbers = #tpu.dot_dimension_numbers<[1], [0], [0], [1], [0, 0, 1, 1], [], []>} : vector<2x32xf32>, vector<32x128xf32>, vector<2x128xf32> -> vector<2x128xf32>
    %c0_26 = arith.constant 0 : index
    %c0_27 = arith.constant 0 : index
    %58 = vector.load %arg8[%c0_26, %c0_27] : memref<32x2xf32, #tpu.memory_space<vmem>>, vector<32x2xf32>
    %c0_28 = arith.constant 0 : index
    %c0_29 = arith.constant 0 : index
    %59 = vector.load %arg9[%c0_28, %c0_29] : memref<32x1xf32, #tpu.memory_space<vmem>>, vector<32x1xf32>
    %c0_30 = arith.constant 0 : index
    %c0_31 = arith.constant 0 : index
    %60 = vector.load %arg10[%c0_30, %c0_31] : memref<32x32xf32, #tpu.memory_space<vmem>>, vector<32x32xf32>
    %c0_32 = arith.constant 0 : index
    %c0_33 = arith.constant 0 : index
    %61 = vector.load %arg11[%c0_32, %c0_33] : memref<32x1xf32, #tpu.memory_space<vmem>>, vector<32x1xf32>
    %c0_34 = arith.constant 0 : index
    %c0_35 = arith.constant 0 : index
    %62 = vector.load %arg12[%c0_34, %c0_35] : memref<2x32xf32, #tpu.memory_space<vmem>>, vector<2x32xf32>
    %c0_36 = arith.constant 0 : index
    %c0_37 = arith.constant 0 : index
    %63 = vector.load %arg13[%c0_36, %c0_37] : memref<2x1xf32, #tpu.memory_space<vmem>>, vector<2x1xf32>
    %64 = vector.extract_strided_slice %58 {offsets = [0, 0], sizes = [32, 1], strides = [1, 1]} : vector<32x2xf32> to vector<32x1xf32>
    %65 = vector.extract_strided_slice %55 {offsets = [0, 0], sizes = [1, 128], strides = [1, 1]} : vector<2x128xf32> to vector<1x128xf32>
    %66 = vector.broadcast %64 : vector<32x1xf32> to vector<32x128xf32>
    %67 = vector.broadcast %65 : vector<1x128xf32> to vector<32x128xf32>
    %68 = arith.mulf %66, %67 : vector<32x128xf32>
    %69 = vector.extract_strided_slice %58 {offsets = [0, 1], sizes = [32, 1], strides = [1, 1]} : vector<32x2xf32> to vector<32x1xf32>
    %70 = vector.extract_strided_slice %55 {offsets = [1, 0], sizes = [1, 128], strides = [1, 1]} : vector<2x128xf32> to vector<1x128xf32>
    %71 = vector.broadcast %69 : vector<32x1xf32> to vector<32x128xf32>
    %72 = vector.broadcast %70 : vector<1x128xf32> to vector<32x128xf32>
    %73 = arith.mulf %71, %72 : vector<32x128xf32>
    %74 = arith.addf %68, %73 : vector<32x128xf32>
    %75 = vector.broadcast %59 : vector<32x1xf32> to vector<32x128xf32>
    %76 = arith.addf %74, %75 : vector<32x128xf32>
    %cst_38 = arith.constant 5.000000e-01 : f32
    %77 = vector.broadcast %cst_38 : f32 to vector<32x128xf32>
    %78 = arith.mulf %77, %76 : vector<32x128xf32>
    %79 = math.tanh %78 : vector<32x128xf32>
    %cst_39 = arith.constant 5.000000e-01 : f32
    %80 = vector.broadcast %cst_39 : f32 to vector<32x128xf32>
    %81 = arith.mulf %80, %79 : vector<32x128xf32>
    %cst_40 = arith.constant 5.000000e-01 : f32
    %82 = vector.broadcast %cst_40 : f32 to vector<32x128xf32>
    %83 = arith.addf %81, %82 : vector<32x128xf32>
    %cst_41 = arith.constant 1.000000e+00 : f32
    %84 = vector.broadcast %cst_41 : f32 to vector<32x128xf32>
    %85 = arith.subf %84, %83 : vector<32x128xf32>
    %86 = arith.mulf %83, %85 : vector<32x128xf32>
    %87 = vector.extract_strided_slice %58 {offsets = [0, 0], sizes = [32, 1], strides = [1, 1]} : vector<32x2xf32> to vector<32x1xf32>
    %88 = vector.broadcast %87 : vector<32x1xf32> to vector<32x128xf32>
    %89 = arith.mulf %86, %88 : vector<32x128xf32>
    %90 = vector.extract_strided_slice %58 {offsets = [0, 1], sizes = [32, 1], strides = [1, 1]} : vector<32x2xf32> to vector<32x1xf32>
    %91 = vector.broadcast %90 : vector<32x1xf32> to vector<32x128xf32>
    %92 = arith.mulf %86, %91 : vector<32x128xf32>
    %cst_42 = arith.constant dense<0.000000e+00> : vector<32x128xf32>
    %93 = tpu.matmul %60, %83, %cst_42 {dimension_numbers = #tpu.dot_dimension_numbers<[1], [0], [0], [1], [0, 0, 1, 1], [], []>} : vector<32x32xf32>, vector<32x128xf32>, vector<32x128xf32> -> vector<32x128xf32>
    %94 = vector.broadcast %61 : vector<32x1xf32> to vector<32x128xf32>
    %95 = arith.addf %93, %94 : vector<32x128xf32>
    %cst_43 = arith.constant 5.000000e-01 : f32
    %96 = vector.broadcast %cst_43 : f32 to vector<32x128xf32>
    %97 = arith.mulf %96, %95 : vector<32x128xf32>
    %98 = math.tanh %97 : vector<32x128xf32>
    %cst_44 = arith.constant 5.000000e-01 : f32
    %99 = vector.broadcast %cst_44 : f32 to vector<32x128xf32>
    %100 = arith.mulf %99, %98 : vector<32x128xf32>
    %cst_45 = arith.constant 5.000000e-01 : f32
    %101 = vector.broadcast %cst_45 : f32 to vector<32x128xf32>
    %102 = arith.addf %100, %101 : vector<32x128xf32>
    %cst_46 = arith.constant 1.000000e+00 : f32
    %103 = vector.broadcast %cst_46 : f32 to vector<32x128xf32>
    %104 = arith.subf %103, %102 : vector<32x128xf32>
    %105 = arith.mulf %102, %104 : vector<32x128xf32>
    %cst_47 = arith.constant dense<0.000000e+00> : vector<32x128xf32>
    %106 = tpu.matmul %60, %89, %cst_47 {dimension_numbers = #tpu.dot_dimension_numbers<[1], [0], [0], [1], [0, 0, 1, 1], [], []>} : vector<32x32xf32>, vector<32x128xf32>, vector<32x128xf32> -> vector<32x128xf32>
    %107 = arith.mulf %105, %106 : vector<32x128xf32>
    %cst_48 = arith.constant dense<0.000000e+00> : vector<32x128xf32>
    %108 = tpu.matmul %60, %92, %cst_48 {dimension_numbers = #tpu.dot_dimension_numbers<[1], [0], [0], [1], [0, 0, 1, 1], [], []>} : vector<32x32xf32>, vector<32x128xf32>, vector<32x128xf32> -> vector<32x128xf32>
    %109 = arith.mulf %105, %108 : vector<32x128xf32>
    %cst_49 = arith.constant dense<0.000000e+00> : vector<2x128xf32>
    %110 = tpu.matmul %62, %102, %cst_49 {dimension_numbers = #tpu.dot_dimension_numbers<[1], [0], [0], [1], [0, 0, 1, 1], [], []>} : vector<2x32xf32>, vector<32x128xf32>, vector<2x128xf32> -> vector<2x128xf32>
    %111 = vector.broadcast %63 : vector<2x1xf32> to vector<2x128xf32>
    %112 = arith.addf %110, %111 : vector<2x128xf32>
    %cst_50 = arith.constant dense<0.000000e+00> : vector<2x128xf32>
    %113 = tpu.matmul %62, %107, %cst_50 {dimension_numbers = #tpu.dot_dimension_numbers<[1], [0], [0], [1], [0, 0, 1, 1], [], []>} : vector<2x32xf32>, vector<32x128xf32>, vector<2x128xf32> -> vector<2x128xf32>
    %cst_51 = arith.constant dense<0.000000e+00> : vector<2x128xf32>
    %114 = tpu.matmul %62, %109, %cst_51 {dimension_numbers = #tpu.dot_dimension_numbers<[1], [0], [0], [1], [0, 0, 1, 1], [], []>} : vector<2x32xf32>, vector<32x128xf32>, vector<2x128xf32> -> vector<2x128xf32>
    %c0_52 = arith.constant 0 : index
    %c0_53 = arith.constant 0 : index
    %115 = vector.load %arg14[%c0_52, %c0_53] : memref<12x128xf32, #tpu.memory_space<vmem>>, vector<2x128xf32>
    tpu.vector_store %arg14[%c0_52, %c0_53], %55 {strides = array<i32>} : memref<12x128xf32, #tpu.memory_space<vmem>>, vector<2x128xf32>,
    %c2 = arith.constant 2 : index
    %c0_54 = arith.constant 0 : index
    %116 = vector.load %arg14[%c2, %c0_54] : memref<12x128xf32, #tpu.memory_space<vmem>>, vector<2x128xf32>
    tpu.vector_store %arg14[%c2, %c0_54], %56 {strides = array<i32>} : memref<12x128xf32, #tpu.memory_space<vmem>>, vector<2x128xf32>,
    %c4 = arith.constant 4 : index
    %c0_55 = arith.constant 0 : index
    %117 = vector.load %arg14[%c4, %c0_55] : memref<12x128xf32, #tpu.memory_space<vmem>>, vector<2x128xf32>
    tpu.vector_store %arg14[%c4, %c0_55], %57 {strides = array<i32>} : memref<12x128xf32, #tpu.memory_space<vmem>>, vector<2x128xf32>,
    %c6 = arith.constant 6 : index
    %c0_56 = arith.constant 0 : index
    %118 = vector.load %arg14[%c6, %c0_56] : memref<12x128xf32, #tpu.memory_space<vmem>>, vector<2x128xf32>
    tpu.vector_store %arg14[%c6, %c0_56], %112 {strides = array<i32>} : memref<12x128xf32, #tpu.memory_space<vmem>>, vector<2x128xf32>,
    %c8 = arith.constant 8 : index
    %c0_57 = arith.constant 0 : index
    %119 = vector.load %arg14[%c8, %c0_57] : memref<12x128xf32, #tpu.memory_space<vmem>>, vector<2x128xf32>
    tpu.vector_store %arg14[%c8, %c0_57], %113 {strides = array<i32>} : memref<12x128xf32, #tpu.memory_space<vmem>>, vector<2x128xf32>,
    %c10 = arith.constant 10 : index
    %c0_58 = arith.constant 0 : index
    %120 = vector.load %arg14[%c10, %c0_58] : memref<12x128xf32, #tpu.memory_space<vmem>>, vector<2x128xf32>
    tpu.vector_store %arg14[%c10, %c0_58], %114 {strides = array<i32>} : memref<12x128xf32, #tpu.memory_space<vmem>>, vector<2x128xf32>,
    return
  }
  func.func @transform_0(%arg0: i32) -> (i32, i32) {
    %c0_i32 = arith.constant 0 : i32
    %c0_i32_0 = arith.constant 0 : i32
    return %c0_i32, %arg0 : i32, i32
  }
  func.func @transform_1(%arg0: i32) -> (i32, i32) {
    %c0_i32 = arith.constant 0 : i32
    %c0_i32_0 = arith.constant 0 : i32
    %c0_i32_1 = arith.constant 0 : i32
    return %c0_i32, %c0_i32_0 : i32, i32
  }
  func.func @transform_2(%arg0: i32) -> (i32, i32) {
    %c0_i32 = arith.constant 0 : i32
    %c0_i32_0 = arith.constant 0 : i32
    %c0_i32_1 = arith.constant 0 : i32
    return %c0_i32, %c0_i32_0 : i32, i32
  }
  func.func @transform_3(%arg0: i32) -> (i32, i32) {
    %c0_i32 = arith.constant 0 : i32
    %c0_i32_0 = arith.constant 0 : i32
    %c0_i32_1 = arith.constant 0 : i32
    return %c0_i32, %c0_i32_0 : i32, i32
  }
  func.func @transform_4(%arg0: i32) -> (i32, i32) {
    %c0_i32 = arith.constant 0 : i32
    %c0_i32_0 = arith.constant 0 : i32
    %c0_i32_1 = arith.constant 0 : i32
    return %c0_i32, %c0_i32_0 : i32, i32
  }
  func.func @transform_5(%arg0: i32) -> (i32, i32) {
    %c0_i32 = arith.constant 0 : i32
    %c0_i32_0 = arith.constant 0 : i32
    %c0_i32_1 = arith.constant 0 : i32
    return %c0_i32, %c0_i32_0 : i32, i32
  }
  func.func @transform_6(%arg0: i32) -> (i32, i32) {
    %c0_i32 = arith.constant 0 : i32
    %c0_i32_0 = arith.constant 0 : i32
    %c0_i32_1 = arith.constant 0 : i32
    return %c0_i32, %c0_i32_0 : i32, i32
  }
  func.func @transform_7(%arg0: i32) -> (i32, i32) {
    %c0_i32 = arith.constant 0 : i32
    %c0_i32_0 = arith.constant 0 : i32
    %c0_i32_1 = arith.constant 0 : i32
    return %c0_i32, %c0_i32_0 : i32, i32
  }
  func.func @transform_8(%arg0: i32) -> (i32, i32) {
    %c0_i32 = arith.constant 0 : i32
    %c0_i32_0 = arith.constant 0 : i32
    %c0_i32_1 = arith.constant 0 : i32
    return %c0_i32, %c0_i32_0 : i32, i32
  }
  func.func @transform_9(%arg0: i32) -> (i32, i32) {
    %c0_i32 = arith.constant 0 : i32
    %c0_i32_0 = arith.constant 0 : i32
    %c0_i32_1 = arith.constant 0 : i32
    return %c0_i32, %c0_i32_0 : i32, i32
  }
  func.func @transform_10(%arg0: i32) -> (i32, i32) {
    %c0_i32 = arith.constant 0 : i32
    %c0_i32_0 = arith.constant 0 : i32
    %c0_i32_1 = arith.constant 0 : i32
    return %c0_i32, %c0_i32_0 : i32, i32
  }
  func.func @transform_11(%arg0: i32) -> (i32, i32) {
    %c0_i32 = arith.constant 0 : i32
    %c0_i32_0 = arith.constant 0 : i32
    %c0_i32_1 = arith.constant 0 : i32
    return %c0_i32, %c0_i32_0 : i32, i32
  }
  func.func @transform_12(%arg0: i32) -> (i32, i32) {
    %c0_i32 = arith.constant 0 : i32
    %c0_i32_0 = arith.constant 0 : i32
    %c0_i32_1 = arith.constant 0 : i32
    return %c0_i32, %c0_i32_0 : i32, i32
  }
  func.func @transform_13(%arg0: i32) -> (i32, i32) {
    %c0_i32 = arith.constant 0 : i32
    %c0_i32_0 = arith.constant 0 : i32
    return %c0_i32, %arg0 : i32, i32
  }
}

</mosaic_0001>

<llo_original>
// kernel: tpu_custom_call.1
$region0: #{tpu_custom_call.1}
  #allocation0 [shape = 'u32[]', space=smem, size = 0x4, offset = 0x4, fixed_abs, tag = 'smem constant byte address 0x4 - core index']
  #allocation1 [shape = 'u32[72,128]{1,0:T(1,128)}', space=vmem, size = 0x9000, scoped, tag = 'internal scratch']
  %s0 = inlined_call_operand.vmem [shape: f32[2,128], index: 0, kind: input, shape index: {}]
  %s1 = inlined_call_operand.vmem [shape: f32[32,2], index: 1, kind: input, shape index: {}]
  %s2 = inlined_call_operand.vmem [shape: f32[32,1], index: 2, kind: input, shape index: {}]
  %s3 = inlined_call_operand.vmem [shape: f32[32,32], index: 3, kind: input, shape index: {}]
  %s4 = inlined_call_operand.vmem [shape: f32[32,1], index: 4, kind: input, shape index: {}]
  %s5 = inlined_call_operand.vmem [shape: f32[2,32], index: 5, kind: input, shape index: {}]
  %s6 = inlined_call_operand.vmem [shape: f32[2,1], index: 6, kind: input, shape index: {}]
  %s7 = inlined_call_operand.vmem [shape: f32[32,2], index: 7, kind: input, shape index: {}]
  %s8 = inlined_call_operand.vmem [shape: f32[32,1], index: 8, kind: input, shape index: {}]
  %s9 = inlined_call_operand.vmem [shape: f32[32,32], index: 9, kind: input, shape index: {}]
  %s10 = inlined_call_operand.vmem [shape: f32[32,1], index: 10, kind: input, shape index: {}]
  %s11 = inlined_call_operand.vmem [shape: f32[2,32], index: 11, kind: input, shape index: {}]
  %s12 = inlined_call_operand.vmem [shape: f32[2,1], index: 12, kind: input, shape index: {}]
  %s13 = inlined_call_operand.hbm [shape: f32[12,128], index: 13, kind: output, shape index: {}]
  %s14 = sld [smem:[#allocation0]]
  $region62: #{tpu_custom_call.1} parent=0
    _
  %s16 = ssub.s32 1, %s14
  %s17 = scalar_select 0, %s16, %s14
  $region1: #{tpu_custom_call.1} parent=0
    #allocation2 [shape = 'u8[8192]{0}', space=vmem, size = 0x2000, scoped, tag = 'output window, operand 0, single buffered']
    #allocation3 [shape = 's32[1]{0}', space=sflag, size = 0x4, scoped, tag = 'scoped memory for tpu_custom_call.1']
    %18 = vsyncpa [#allocation3], 0
    // Predicated region
    $region2: #{tpu_custom_call.1} parent=1 // pred_check
      _
    $region3: #{tpu_custom_call.1} parent=1 // pred_check_branch
      %20 = sbr.rel (0) target = $region5
    $region4: #{tpu_custom_call.1} parent=1 // pred_region
      _
    $region5: #{tpu_custom_call.1} parent=1 // pred_fallthru
      _
    // Predicated region
    $region6: #{tpu_custom_call.1} parent=1 // pred_check
      _
    $region7: #{tpu_custom_call.1} parent=1 // pred_check_branch
      %22 = sbr.rel (0) target = $region9
    $region8: #{tpu_custom_call.1} parent=1 // pred_region
      _
    $region9: #{tpu_custom_call.1} parent=1 // pred_fallthru
      _
    // Predicated region
    $region10: #{tpu_custom_call.1} parent=1 // pred_check
      _
    $region11: #{tpu_custom_call.1} parent=1 // pred_check_branch
      %24 = sbr.rel (0) target = $region13
    $region12: #{tpu_custom_call.1} parent=1 // pred_region
      _
    $region13: #{tpu_custom_call.1} parent=1 // pred_fallthru
      _
    // Predicated region
    $region14: #{tpu_custom_call.1} parent=1 // pred_check
      _
    $region15: #{tpu_custom_call.1} parent=1 // pred_check_branch
      %26 = sbr.rel (0) target = $region17
    $region16: #{tpu_custom_call.1} parent=1 // pred_region
      _
    $region17: #{tpu_custom_call.1} parent=1 // pred_fallthru
      _
    // Predicated region
    $region18: #{tpu_custom_call.1} parent=1 // pred_check
      _
    $region19: #{tpu_custom_call.1} parent=1 // pred_check_branch
      %28 = sbr.rel (0) target = $region21
    $region20: #{tpu_custom_call.1} parent=1 // pred_region
      _
    $region21: #{tpu_custom_call.1} parent=1 // pred_fallthru
      _
    // Predicated region
    $region22: #{tpu_custom_call.1} parent=1 // pred_check
      _
    $region23: #{tpu_custom_call.1} parent=1 // pred_check_branch
      %30 = sbr.rel (0) target = $region25
    $region24: #{tpu_custom_call.1} parent=1 // pred_region
      _
    $region25: #{tpu_custom_call.1} parent=1 // pred_fallthru
      _
    // Predicated region
    $region26: #{tpu_custom_call.1} parent=1 // pred_check
      _
    $region27: #{tpu_custom_call.1} parent=1 // pred_check_branch
      %32 = sbr.rel (0) target = $region29
    $region28: #{tpu_custom_call.1} parent=1 // pred_region
      _
    $region29: #{tpu_custom_call.1} parent=1 // pred_fallthru
      _
    // Predicated region
    $region30: #{tpu_custom_call.1} parent=1 // pred_check
      _
    $region31: #{tpu_custom_call.1} parent=1 // pred_check_branch
      %34 = sbr.rel (0) target = $region33
    $region32: #{tpu_custom_call.1} parent=1 // pred_region
      _
    $region33: #{tpu_custom_call.1} parent=1 // pred_fallthru
      _
    // Predicated region
    $region34: #{tpu_custom_call.1} parent=1 // pred_check
      _
    $region35: #{tpu_custom_call.1} parent=1 // pred_check_branch
      %36 = sbr.rel (0) target = $region37
    $region36: #{tpu_custom_call.1} parent=1 // pred_region
      _
    $region37: #{tpu_custom_call.1} parent=1 // pred_fallthru
      _
    // Predicated region
    $region38: #{tpu_custom_call.1} parent=1 // pred_check
      _
    $region39: #{tpu_custom_call.1} parent=1 // pred_check_branch
      %38 = sbr.rel (0) target = $region41
    $region40: #{tpu_custom_call.1} parent=1 // pred_region
      _
    $region41: #{tpu_custom_call.1} parent=1 // pred_fallthru
      _
    // Predicated region
    $region42: #{tpu_custom_call.1} parent=1 // pred_check
      _
    $region43: #{tpu_custom_call.1} parent=1 // pred_check_branch
      %40 = sbr.rel (0) target = $region45
    $region44: #{tpu_custom_call.1} parent=1 // pred_region
      _
    $region45: #{tpu_custom_call.1} parent=1 // pred_fallthru
      _
    // Predicated region
    $region46: #{tpu_custom_call.1} parent=1 // pred_check
      _
    $region47: #{tpu_custom_call.1} parent=1 // pred_check_branch
      %42 = sbr.rel (0) target = $region49
    $region48: #{tpu_custom_call.1} parent=1 // pred_region
      _
    $region49: #{tpu_custom_call.1} parent=1 // pred_fallthru
      _
    // Predicated region
    $region50: #{tpu_custom_call.1} parent=1 // pred_check
      _
    $region51: #{tpu_custom_call.1} parent=1 // pred_check_branch
      %44 = sbr.rel (0) target = $region53
    $region52: #{tpu_custom_call.1} parent=1 // pred_region
      _
    $region53: #{tpu_custom_call.1} parent=1 // pred_fallthru
      _
    %v45 = vld [vmem:[%s0] sm:$0x3]
    %v46 = vld [vmem:[%s1] sm:$0xff]
    %v47 = vld [vmem:[%s1 + $0x8] sm:$0xff]
    %v48 = vld [vmem:[%s1 + $0x10] sm:$0xff]
    %v49 = vld [vmem:[%s1 + $0x18] sm:$0xff]
    %v50 = vld [vmem:[%s2] sm:$0xff]
    %v51 = vld [vmem:[%s2 + $0x8] sm:$0xff]
    %v52 = vld [vmem:[%s2 + $0x10] sm:$0xff]
    %v53 = vld [vmem:[%s2 + $0x18] sm:$0xff]
    %v54 = vld [vmem:[%s3] sm:$0xff]
    %v55 = vld [vmem:[%s3 + $0x8] sm:$0xff]
    %v56 = vld [vmem:[%s3 + $0x10] sm:$0xff]
    %v57 = vld [vmem:[%s3 + $0x18] sm:$0xff]
    %v58 = vld [vmem:[%s4] sm:$0xff]
    %v59 = vld [vmem:[%s4 + $0x8] sm:$0xff]
    %v60 = vld [vmem:[%s4 + $0x10] sm:$0xff]
    %v61 = vld [vmem:[%s4 + $0x18] sm:$0xff]
    %v62 = vld [vmem:[%s5] sm:$0x3]
    %v63 = vld [vmem:[%s6] sm:$0x3]
    %65 = vset.pattern.permute.xlu0 0
    %66 = vperm.xlu0 %65, %v46
    %v67 = vpop.permute.xlu0 %66
    %70 = vset.pattern.permute.xlu0 0
    %71 = vperm.xlu0 %70, %v47
    %v72 = vpop.permute.xlu0 %71
    %75 = vset.pattern.permute.xlu0 0
    %76 = vperm.xlu0 %75, %v48
    %v77 = vpop.permute.xlu0 %76
    %80 = vset.pattern.permute.xlu0 0
    %81 = vperm.xlu0 %80, %v49
    %v82 = vpop.permute.xlu0 %81
    %v84 = vperm.slane %v45, 0
    %v85 = vmul.f32 %v67, %v84
    %v86 = vmul.f32 %v72, %v84
    %v87 = vmul.f32 %v77, %v84
    %v88 = vmul.f32 %v82, %v84
    %89 = vset.pattern.permute.xlu0 1
    %90 = vperm.xlu0 %89, %v46
    %v91 = vpop.permute.xlu0 %90
    %93 = vset.pattern.permute.xlu0 1
    %94 = vperm.xlu0 %93, %v47
    %v95 = vpop.permute.xlu0 %94
    %97 = vset.pattern.permute.xlu0 1
    %98 = vperm.xlu0 %97, %v48
    %v99 = vpop.permute.xlu0 %98
    %101 = vset.pattern.permute.xlu0 1
    %102 = vperm.xlu0 %101, %v49
    %v103 = vpop.permute.xlu0 %102
    %v105 = vperm.slane %v45, 1
    %v106 = vmul.f32 %v91, %v105
    %v107 = vmul.f32 %v95, %v105
    %v108 = vmul.f32 %v99, %v105
    %v109 = vmul.f32 %v103, %v105
    %v110 = vadd.f32 %v85, %v106
    %v111 = vadd.f32 %v86, %v107
    %v112 = vadd.f32 %v87, %v108
    %v113 = vadd.f32 %v88, %v109
    %115 = vset.pattern.permute.xlu0 0
    %116 = vperm.xlu0 %115, %v50
    %v117 = vpop.permute.xlu0 %116
    %120 = vset.pattern.permute.xlu0 0
    %121 = vperm.xlu0 %120, %v51
    %v122 = vpop.permute.xlu0 %121
    %125 = vset.pattern.permute.xlu0 0
    %126 = vperm.xlu0 %125, %v52
    %v127 = vpop.permute.xlu0 %126
    %130 = vset.pattern.permute.xlu0 0
    %131 = vperm.xlu0 %130, %v53
    %v132 = vpop.permute.xlu0 %131
    %v134 = vadd.f32 %v110, %v117
    %v135 = vadd.f32 %v111, %v122
    %v136 = vadd.f32 %v112, %v127
    %v137 = vadd.f32 %v113, %v132
    %v138 = vmul.f32 %v134, 0.5
    %v139 = vmul.f32 %v135, 0.5
    %v140 = vmul.f32 %v136, 0.5
    %v141 = vmul.f32 %v137, 0.5
    %v142 = vtanh.pop %v138
    %v143 = vtanh.pop %v139
    %v144 = vtanh.pop %v140
    %v145 = vtanh.pop %v141
    %v146 = vmul.f32 %v142, 0.5
    %v147 = vmul.f32 %v143, 0.5
    %v148 = vmul.f32 %v144, 0.5
    %v149 = vmul.f32 %v145, 0.5
    %v150 = vadd.f32 %v146, 0.5
    %v151 = vadd.f32 %v147, 0.5
    %v152 = vadd.f32 %v148, 0.5
    %v153 = vadd.f32 %v149, 0.5
    %v154 = vsub.f32 1.0, %v150
    %v155 = vsub.f32 1.0, %v151
    %v156 = vsub.f32 1.0, %v152
    %v157 = vsub.f32 1.0, %v153
    %v158 = vmul.f32 %v150, %v154
    %v159 = vmul.f32 %v151, %v155
    %v160 = vmul.f32 %v152, %v156
    %v161 = vmul.f32 %v153, %v157
    %v162 = vmul.f32 %v158, %v67
    %v163 = vmul.f32 %v159, %v72
    %v164 = vmul.f32 %v160, %v77
    %v165 = vmul.f32 %v161, %v82
    %v166 = vmul.f32 %v158, %v91
    %v167 = vmul.f32 %v159, %v95
    %v168 = vmul.f32 %v160, %v99
    %v169 = vmul.f32 %v161, %v103
    %171 = vset.pattern.permute.xlu0 0
    %172 = vperm.xlu0 %171, %v58
    %v173 = vpop.permute.xlu0 %172
    %176 = vset.pattern.permute.xlu0 0
    %177 = vperm.xlu0 %176, %v59
    %v178 = vpop.permute.xlu0 %177
    %181 = vset.pattern.permute.xlu0 0
    %182 = vperm.xlu0 %181, %v60
    %v183 = vpop.permute.xlu0 %182
    %186 = vset.pattern.permute.xlu0 0
    %187 = vperm.xlu0 %186, %v61
    %v188 = vpop.permute.xlu0 %187
    %vm190 = vcmask 261120
    %v192 = vsel %vm190, %v54, 0
    %v195 = vsel %vm190, %v55, 0
    %v198 = vsel %vm190, %v56, 0
    %v201 = vsel %vm190, %v57, 0
    %203 = vmatpush.msra.mxu0 0.0
    %204 = vmatpush.msra.mxu0 0.0
    %205 = vmatpush.msra.mxu0 0.0
    %206 = vmatpush.msra.mxu0 0.0
    %207 = vmatpush.msra.mxu0 0.0
    %208 = vmatpush.msra.mxu0 0.0
    %209 = vmatpush.msra.mxu0 0.0
    %210 = vmatpush.msra.mxu0 0.0
    %211 = vmatpush.msra.mxu0 0.0
    %212 = vmatpush.msra.mxu0 0.0
    %213 = vmatpush.msra.mxu0 0.0
    %214 = vmatpush.msra.mxu0 0.0
    %215 = vmatpush.msra.mxu0 %v153
    %216 = vmatpush.msra.mxu0 %v152
    %217 = vmatpush.msra.mxu0 %v151
    %218 = vmatpush.msra.mxu0 %v150
    %219 = vmatmul.f32.gmra.mxu0 %v192
    %v220 = vpop.f32.mrf.mxu0
    %v221 = vadd.f32 %v173, %v220
    %222 = vmatmul.f32.gmra.mxu0 %v195
    %v223 = vpop.f32.mrf.mxu0
    %v224 = vadd.f32 %v178, %v223
    %225 = vmatmul.f32.gmra.mxu0 %v198
    %v226 = vpop.f32.mrf.mxu0
    %v227 = vadd.f32 %v183, %v226
    %228 = vmatmul.f32.gmra.mxu0 %v201
    %v229 = vpop.f32.mrf.mxu0
    %v230 = vadd.f32 %v188, %v229
    %231 = vdwg.mxu0
    %v232 = vmul.f32 %v221, 0.5
    %v233 = vmul.f32 %v224, 0.5
    %v234 = vmul.f32 %v227, 0.5
    %v235 = vmul.f32 %v230, 0.5
    %v236 = vtanh.pop %v232
    %v237 = vtanh.pop %v233
    %v238 = vtanh.pop %v234
    %v239 = vtanh.pop %v235
    %v240 = vmul.f32 %v236, 0.5
    %v241 = vmul.f32 %v237, 0.5
    %v242 = vmul.f32 %v238, 0.5
    %v243 = vmul.f32 %v239, 0.5
    %v244 = vadd.f32 %v240, 0.5
    %v245 = vadd.f32 %v241, 0.5
    %v246 = vadd.f32 %v242, 0.5
    %v247 = vadd.f32 %v243, 0.5
    %v248 = vsub.f32 1.0, %v244
    %v249 = vsub.f32 1.0, %v245
    %v250 = vsub.f32 1.0, %v246
    %v251 = vsub.f32 1.0, %v247
    %v252 = vmul.f32 %v244, %v248
    %v253 = vmul.f32 %v245, %v249
    %v254 = vmul.f32 %v246, %v250
    %v255 = vmul.f32 %v247, %v251
    %256 = vmatpush.msra.mxu0 0.0
    %257 = vmatpush.msra.mxu0 0.0
    %258 = vmatpush.msra.mxu0 0.0
    %259 = vmatpush.msra.mxu0 0.0
    %260 = vmatpush.msra.mxu0 0.0
    %261 = vmatpush.msra.mxu0 0.0
    %262 = vmatpush.msra.mxu0 0.0
    %263 = vmatpush.msra.mxu0 0.0
    %264 = vmatpush.msra.mxu0 0.0
    %265 = vmatpush.msra.mxu0 0.0
    %266 = vmatpush.msra.mxu0 0.0
    %267 = vmatpush.msra.mxu0 0.0
    %268 = vmatpush.msra.mxu0 %v165
    %269 = vmatpush.msra.mxu0 %v164
    %270 = vmatpush.msra.mxu0 %v163
    %271 = vmatpush.msra.mxu0 %v162
    %272 = vmatmul.f32.gmra.mxu0 %v192
    %v273 = vpop.f32.mrf.mxu0
    %v274 = vadd.f32 0.0, %v273
    %275 = vmatmul.f32.gmra.mxu0 %v195
    %v276 = vpop.f32.mrf.mxu0
    %v277 = vadd.f32 0.0, %v276
    %278 = vmatmul.f32.gmra.mxu0 %v198
    %v279 = vpop.f32.mrf.mxu0
    %v280 = vadd.f32 0.0, %v279
    %281 = vmatmul.f32.gmra.mxu0 %v201
    %v282 = vpop.f32.mrf.mxu0
    %v283 = vadd.f32 0.0, %v282
    %284 = vdwg.mxu0
    %v285 = vmul.f32 %v252, %v274
    %v286 = vmul.f32 %v253, %v277
    %v287 = vmul.f32 %v254, %v280
    %v288 = vmul.f32 %v255, %v283
    %289 = vmatpush.msra.mxu0 0.0
    %290 = vmatpush.msra.mxu0 0.0
    %291 = vmatpush.msra.mxu0 0.0
    %292 = vmatpush.msra.mxu0 0.0
    %293 = vmatpush.msra.mxu0 0.0
    %294 = vmatpush.msra.mxu0 0.0
    %295 = vmatpush.msra.mxu0 0.0
    %296 = vmatpush.msra.mxu0 0.0
    %297 = vmatpush.msra.mxu0 0.0
    %298 = vmatpush.msra.mxu0 0.0
    %299 = vmatpush.msra.mxu0 0.0
    %300 = vmatpush.msra.mxu0 0.0
    %301 = vmatpush.msra.mxu0 %v169
    %302 = vmatpush.msra.mxu0 %v168
    %303 = vmatpush.msra.mxu0 %v167
    %304 = vmatpush.msra.mxu0 %v166
    %305 = vmatmul.f32.gmra.mxu0 %v192
    %v306 = vpop.f32.mrf.mxu0
    %v307 = vadd.f32 0.0, %v306
    %308 = vmatmul.f32.gmra.mxu0 %v195
    %v309 = vpop.f32.mrf.mxu0
    %v310 = vadd.f32 0.0, %v309
    %311 = vmatmul.f32.gmra.mxu0 %v198
    %v312 = vpop.f32.mrf.mxu0
    %v313 = vadd.f32 0.0, %v312
    %314 = vmatmul.f32.gmra.mxu0 %v201
    %v315 = vpop.f32.mrf.mxu0
    %v316 = vadd.f32 0.0, %v315
    %317 = vdwg.mxu0
    %v318 = vmul.f32 %v252, %v307
    %v319 = vmul.f32 %v253, %v310
    %v320 = vmul.f32 %v254, %v313
    %v321 = vmul.f32 %v255, %v316
    %323 = vset.pattern.permute.xlu0 0
    %324 = vperm.xlu0 %323, %v63
    %v325 = vpop.permute.xlu0 %324
    %v328 = vsel %vm190, %v62, 0
    %330 = vmatpush.msra.mxu0 0.0
    %331 = vmatpush.msra.mxu0 0.0
    %332 = vmatpush.msra.mxu0 0.0
    %333 = vmatpush.msra.mxu0 0.0
    %334 = vmatpush.msra.mxu0 0.0
    %335 = vmatpush.msra.mxu0 0.0
    %336 = vmatpush.msra.mxu0 0.0
    %337 = vmatpush.msra.mxu0 0.0
    %338 = vmatpush.msra.mxu0 0.0
    %339 = vmatpush.msra.mxu0 0.0
    %340 = vmatpush.msra.mxu0 0.0
    %341 = vmatpush.msra.mxu0 0.0
    %342 = vmatpush.msra.mxu0 %v247
    %343 = vmatpush.msra.mxu0 %v246
    %344 = vmatpush.msra.mxu0 %v245
    %345 = vmatpush.msra.mxu0 %v244
    %346 = vmatmul.f32.gmra.mxu0 %v328
    %v347 = vpop.f32.mrf.mxu0
    %v348 = vadd.f32 %v325, %v347
    %349 = vdwg.mxu0
    %350 = vmatpush.msra.mxu0 0.0
    %351 = vmatpush.msra.mxu0 0.0
    %352 = vmatpush.msra.mxu0 0.0
    %353 = vmatpush.msra.mxu0 0.0
    %354 = vmatpush.msra.mxu0 0.0
    %355 = vmatpush.msra.mxu0 0.0
    %356 = vmatpush.msra.mxu0 0.0
    %357 = vmatpush.msra.mxu0 0.0
    %358 = vmatpush.msra.mxu0 0.0
    %359 = vmatpush.msra.mxu0 0.0
    %360 = vmatpush.msra.mxu0 0.0
    %361 = vmatpush.msra.mxu0 0.0
    %362 = vmatpush.msra.mxu0 %v288
    %363 = vmatpush.msra.mxu0 %v287
    %364 = vmatpush.msra.mxu0 %v286
    %365 = vmatpush.msra.mxu0 %v285
    %366 = vmatmul.f32.gmra.mxu0 %v328
    %v367 = vpop.f32.mrf.mxu0
    %v368 = vadd.f32 0.0, %v367
    %369 = vdwg.mxu0
    %370 = vmatpush.msra.mxu0 0.0
    %371 = vmatpush.msra.mxu0 0.0
    %372 = vmatpush.msra.mxu0 0.0
    %373 = vmatpush.msra.mxu0 0.0
    %374 = vmatpush.msra.mxu0 0.0
    %375 = vmatpush.msra.mxu0 0.0
    %376 = vmatpush.msra.mxu0 0.0
    %377 = vmatpush.msra.mxu0 0.0
    %378 = vmatpush.msra.mxu0 0.0
    %379 = vmatpush.msra.mxu0 0.0
    %380 = vmatpush.msra.mxu0 0.0
    %381 = vmatpush.msra.mxu0 0.0
    %382 = vmatpush.msra.mxu0 %v321
    %383 = vmatpush.msra.mxu0 %v320
    %384 = vmatpush.msra.mxu0 %v319
    %385 = vmatpush.msra.mxu0 %v318
    %386 = vmatmul.f32.gmra.mxu0 %v328
    %v387 = vpop.f32.mrf.mxu0
    %v388 = vadd.f32 0.0, %v387
    %389 = vdwg.mxu0
    %v390 = vld [vmem:[%s7] sm:$0xff]
    %v391 = vld [vmem:[%s7 + $0x8] sm:$0xff]
    %v392 = vld [vmem:[%s7 + $0x10] sm:$0xff]
    %v393 = vld [vmem:[%s7 + $0x18] sm:$0xff]
    %v394 = vld [vmem:[%s8] sm:$0xff]
    %v395 = vld [vmem:[%s8 + $0x8] sm:$0xff]
    %v396 = vld [vmem:[%s8 + $0x10] sm:$0xff]
    %v397 = vld [vmem:[%s8 + $0x18] sm:$0xff]
    %v398 = vld [vmem:[%s9] sm:$0xff]
    %v399 = vld [vmem:[%s9 + $0x8] sm:$0xff]
    %v400 = vld [vmem:[%s9 + $0x10] sm:$0xff]
    %v401 = vld [vmem:[%s9 + $0x18] sm:$0xff]
    %v402 = vld [vmem:[%s10] sm:$0xff]
    %v403 = vld [vmem:[%s10 + $0x8] sm:$0xff]
    %v404 = vld [vmem:[%s10 + $0x10] sm:$0xff]
    %v405 = vld [vmem:[%s10 + $0x18] sm:$0xff]
    %v406 = vld [vmem:[%s11] sm:$0x3]
    %v407 = vld [vmem:[%s12] sm:$0x3]
    %409 = vset.pattern.permute.xlu0 0
    %410 = vperm.xlu0 %409, %v390
    %v411 = vpop.permute.xlu0 %410
    %414 = vset.pattern.permute.xlu0 0
    %415 = vperm.xlu0 %414, %v391
    %v416 = vpop.permute.xlu0 %415
    %419 = vset.pattern.permute.xlu0 0
    %420 = vperm.xlu0 %419, %v392
    %v421 = vpop.permute.xlu0 %420
    %424 = vset.pattern.permute.xlu0 0
    %425 = vperm.xlu0 %424, %v393
    %v426 = vpop.permute.xlu0 %425
    %v428 = vperm.slane %v348, 0
    %v429 = vmul.f32 %v411, %v428
    %v430 = vmul.f32 %v416, %v428
    %v431 = vmul.f32 %v421, %v428
    %v432 = vmul.f32 %v426, %v428
    %433 = vset.pattern.permute.xlu0 1
    %434 = vperm.xlu0 %433, %v390
    %v435 = vpop.permute.xlu0 %434
    %437 = vset.pattern.permute.xlu0 1
    %438 = vperm.xlu0 %437, %v391
    %v439 = vpop.permute.xlu0 %438
    %441 = vset.pattern.permute.xlu0 1
    %442 = vperm.xlu0 %441, %v392
    %v443 = vpop.permute.xlu0 %442
    %445 = vset.pattern.permute.xlu0 1
    %446 = vperm.xlu0 %445, %v393
    %v447 = vpop.permute.xlu0 %446
    %v449 = vperm.slane %v348, 1
    %v450 = vmul.f32 %v435, %v449
    %v451 = vmul.f32 %v439, %v449
    %v452 = vmul.f32 %v443, %v449
    %v453 = vmul.f32 %v447, %v449
    %v454 = vadd.f32 %v429, %v450
    %v455 = vadd.f32 %v430, %v451
    %v456 = vadd.f32 %v431, %v452
    %v457 = vadd.f32 %v432, %v453
    %459 = vset.pattern.permute.xlu0 0
    %460 = vperm.xlu0 %459, %v394
    %v461 = vpop.permute.xlu0 %460
    %464 = vset.pattern.permute.xlu0 0
    %465 = vperm.xlu0 %464, %v395
    %v466 = vpop.permute.xlu0 %465
    %469 = vset.pattern.permute.xlu0 0
    %470 = vperm.xlu0 %469, %v396
    %v471 = vpop.permute.xlu0 %470
    %474 = vset.pattern.permute.xlu0 0
    %475 = vperm.xlu0 %474, %v397
    %v476 = vpop.permute.xlu0 %475
    %v478 = vadd.f32 %v454, %v461
    %v479 = vadd.f32 %v455, %v466
    %v480 = vadd.f32 %v456, %v471
    %v481 = vadd.f32 %v457, %v476
    %v482 = vmul.f32 %v478, 0.5
    %v483 = vmul.f32 %v479, 0.5
    %v484 = vmul.f32 %v480, 0.5
    %v485 = vmul.f32 %v481, 0.5
    %v486 = vtanh.pop %v482
    %v487 = vtanh.pop %v483
    %v488 = vtanh.pop %v484
    %v489 = vtanh.pop %v485
    %v490 = vmul.f32 %v486, 0.5
    %v491 = vmul.f32 %v487, 0.5
    %v492 = vmul.f32 %v488, 0.5
    %v493 = vmul.f32 %v489, 0.5
    %v494 = vadd.f32 %v490, 0.5
    %v495 = vadd.f32 %v491, 0.5
    %v496 = vadd.f32 %v492, 0.5
    %v497 = vadd.f32 %v493, 0.5
    %v498 = vsub.f32 1.0, %v494
    %v499 = vsub.f32 1.0, %v495
    %v500 = vsub.f32 1.0, %v496
    %v501 = vsub.f32 1.0, %v497
    %v502 = vmul.f32 %v494, %v498
    %v503 = vmul.f32 %v495, %v499
    %v504 = vmul.f32 %v496, %v500
    %v505 = vmul.f32 %v497, %v501
    %v506 = vmul.f32 %v502, %v411
    %v507 = vmul.f32 %v503, %v416
    %v508 = vmul.f32 %v504, %v421
    %v509 = vmul.f32 %v505, %v426
    %v510 = vmul.f32 %v502, %v435
    %v511 = vmul.f32 %v503, %v439
    %v512 = vmul.f32 %v504, %v443
    %v513 = vmul.f32 %v505, %v447
    %515 = vset.pattern.permute.xlu0 0
    %516 = vperm.xlu0 %515, %v402
    %v517 = vpop.permute.xlu0 %516
    %520 = vset.pattern.permute.xlu0 0
    %521 = vperm.xlu0 %520, %v403
    %v522 = vpop.permute.xlu0 %521
    %525 = vset.pattern.permute.xlu0 0
    %526 = vperm.xlu0 %525, %v404
    %v527 = vpop.permute.xlu0 %526
    %530 = vset.pattern.permute.xlu0 0
    %531 = vperm.xlu0 %530, %v405
    %v532 = vpop.permute.xlu0 %531
    %v535 = vsel %vm190, %v398, 0
    %v538 = vsel %vm190, %v399, 0
    %v541 = vsel %vm190, %v400, 0
    %v544 = vsel %vm190, %v401, 0
    %546 = vmatpush.msra.mxu0 0.0
    %547 = vmatpush.msra.mxu0 0.0
    %548 = vmatpush.msra.mxu0 0.0
    %549 = vmatpush.msra.mxu0 0.0
    %550 = vmatpush.msra.mxu0 0.0
    %551 = vmatpush.msra.mxu0 0.0
    %552 = vmatpush.msra.mxu0 0.0
    %553 = vmatpush.msra.mxu0 0.0
    %554 = vmatpush.msra.mxu0 0.0
    %555 = vmatpush.msra.mxu0 0.0
    %556 = vmatpush.msra.mxu0 0.0
    %557 = vmatpush.msra.mxu0 0.0
    %558 = vmatpush.msra.mxu0 %v497
    %559 = vmatpush.msra.mxu0 %v496
    %560 = vmatpush.msra.mxu0 %v495
    %561 = vmatpush.msra.mxu0 %v494
    %562 = vmatmul.f32.gmra.mxu0 %v535
    %v563 = vpop.f32.mrf.mxu0
    %v564 = vadd.f32 %v517, %v563
    %565 = vmatmul.f32.gmra.mxu0 %v538
    %v566 = vpop.f32.mrf.mxu0
    %v567 = vadd.f32 %v522, %v566
    %568 = vmatmul.f32.gmra.mxu0 %v541
    %v569 = vpop.f32.mrf.mxu0
    %v570 = vadd.f32 %v527, %v569
    %571 = vmatmul.f32.gmra.mxu0 %v544
    %v572 = vpop.f32.mrf.mxu0
    %v573 = vadd.f32 %v532, %v572
    %574 = vdwg.mxu0
    %v575 = vmul.f32 %v564, 0.5
    %v576 = vmul.f32 %v567, 0.5
    %v577 = vmul.f32 %v570, 0.5
    %v578 = vmul.f32 %v573, 0.5
    %v579 = vtanh.pop %v575
    %v580 = vtanh.pop %v576
    %v581 = vtanh.pop %v577
    %v582 = vtanh.pop %v578
    %v583 = vmul.f32 %v579, 0.5
    %v584 = vmul.f32 %v580, 0.5
    %v585 = vmul.f32 %v581, 0.5
    %v586 = vmul.f32 %v582, 0.5
    %v587 = vadd.f32 %v583, 0.5
    %v588 = vadd.f32 %v584, 0.5
    %v589 = vadd.f32 %v585, 0.5
    %v590 = vadd.f32 %v586, 0.5
    %v591 = vsub.f32 1.0, %v587
    %v592 = vsub.f32 1.0, %v588
    %v593 = vsub.f32 1.0, %v589
    %v594 = vsub.f32 1.0, %v590
    %v595 = vmul.f32 %v587, %v591
    %v596 = vmul.f32 %v588, %v592
    %v597 = vmul.f32 %v589, %v593
    %v598 = vmul.f32 %v590, %v594
    %599 = vmatpush.msra.mxu0 0.0
    %600 = vmatpush.msra.mxu0 0.0
    %601 = vmatpush.msra.mxu0 0.0
    %602 = vmatpush.msra.mxu0 0.0
    %603 = vmatpush.msra.mxu0 0.0
    %604 = vmatpush.msra.mxu0 0.0
    %605 = vmatpush.msra.mxu0 0.0
    %606 = vmatpush.msra.mxu0 0.0
    %607 = vmatpush.msra.mxu0 0.0
    %608 = vmatpush.msra.mxu0 0.0
    %609 = vmatpush.msra.mxu0 0.0
    %610 = vmatpush.msra.mxu0 0.0
    %611 = vmatpush.msra.mxu0 %v509
    %612 = vmatpush.msra.mxu0 %v508
    %613 = vmatpush.msra.mxu0 %v507
    %614 = vmatpush.msra.mxu0 %v506
    %615 = vmatmul.f32.gmra.mxu0 %v535
    %v616 = vpop.f32.mrf.mxu0
    %v617 = vadd.f32 0.0, %v616
    %618 = vmatmul.f32.gmra.mxu0 %v538
    %v619 = vpop.f32.mrf.mxu0
    %v620 = vadd.f32 0.0, %v619
    %621 = vmatmul.f32.gmra.mxu0 %v541
    %v622 = vpop.f32.mrf.mxu0
    %v623 = vadd.f32 0.0, %v622
    %624 = vmatmul.f32.gmra.mxu0 %v544
    %v625 = vpop.f32.mrf.mxu0
    %v626 = vadd.f32 0.0, %v625
    %627 = vdwg.mxu0
    %v628 = vmul.f32 %v595, %v617
    %v629 = vmul.f32 %v596, %v620
    %v630 = vmul.f32 %v597, %v623
    %v631 = vmul.f32 %v598, %v626
    %632 = vmatpush.msra.mxu0 0.0
    %633 = vmatpush.msra.mxu0 0.0
    %634 = vmatpush.msra.mxu0 0.0
    %635 = vmatpush.msra.mxu0 0.0
    %636 = vmatpush.msra.mxu0 0.0
    %637 = vmatpush.msra.mxu0 0.0
    %638 = vmatpush.msra.mxu0 0.0
    %639 = vmatpush.msra.mxu0 0.0
    %640 = vmatpush.msra.mxu0 0.0
    %641 = vmatpush.msra.mxu0 0.0
    %642 = vmatpush.msra.mxu0 0.0
    %643 = vmatpush.msra.mxu0 0.0
    %644 = vmatpush.msra.mxu0 %v513
    %645 = vmatpush.msra.mxu0 %v512
    %646 = vmatpush.msra.mxu0 %v511
    %647 = vmatpush.msra.mxu0 %v510
    %648 = vmatmul.f32.gmra.mxu0 %v535
    %v649 = vpop.f32.mrf.mxu0
    %v650 = vadd.f32 0.0, %v649
    %651 = vmatmul.f32.gmra.mxu0 %v538
    %v652 = vpop.f32.mrf.mxu0
    %v653 = vadd.f32 0.0, %v652
    %654 = vmatmul.f32.gmra.mxu0 %v541
    %v655 = vpop.f32.mrf.mxu0
    %v656 = vadd.f32 0.0, %v655
    %657 = vmatmul.f32.gmra.mxu0 %v544
    %v658 = vpop.f32.mrf.mxu0
    %v659 = vadd.f32 0.0, %v658
    %660 = vdwg.mxu0
    %v661 = vmul.f32 %v595, %v650
    %v662 = vmul.f32 %v596, %v653
    %v663 = vmul.f32 %v597, %v656
    %v664 = vmul.f32 %v598, %v659
    %666 = vset.pattern.permute.xlu0 0
    %667 = vperm.xlu0 %666, %v407
    %v668 = vpop.permute.xlu0 %667
    %v671 = vsel %vm190, %v406, 0
    %673 = vmatpush.msra.mxu0 0.0
    %674 = vmatpush.msra.mxu0 0.0
    %675 = vmatpush.msra.mxu0 0.0
    %676 = vmatpush.msra.mxu0 0.0
    %677 = vmatpush.msra.mxu0 0.0
    %678 = vmatpush.msra.mxu0 0.0
    %679 = vmatpush.msra.mxu0 0.0
    %680 = vmatpush.msra.mxu0 0.0
    %681 = vmatpush.msra.mxu0 0.0
    %682 = vmatpush.msra.mxu0 0.0
    %683 = vmatpush.msra.mxu0 0.0
    %684 = vmatpush.msra.mxu0 0.0
    %685 = vmatpush.msra.mxu0 %v590
    %686 = vmatpush.msra.mxu0 %v589
    %687 = vmatpush.msra.mxu0 %v588
    %688 = vmatpush.msra.mxu0 %v587
    %689 = vmatmul.f32.gmra.mxu0 %v671
    %v690 = vpop.f32.mrf.mxu0
    %v691 = vadd.f32 %v668, %v690
    %692 = vdwg.mxu0
    %693 = vmatpush.msra.mxu0 0.0
    %694 = vmatpush.msra.mxu0 0.0
    %695 = vmatpush.msra.mxu0 0.0
    %696 = vmatpush.msra.mxu0 0.0
    %697 = vmatpush.msra.mxu0 0.0
    %698 = vmatpush.msra.mxu0 0.0
    %699 = vmatpush.msra.mxu0 0.0
    %700 = vmatpush.msra.mxu0 0.0
    %701 = vmatpush.msra.mxu0 0.0
    %702 = vmatpush.msra.mxu0 0.0
    %703 = vmatpush.msra.mxu0 0.0
    %704 = vmatpush.msra.mxu0 0.0
    %705 = vmatpush.msra.mxu0 %v631
    %706 = vmatpush.msra.mxu0 %v630
    %707 = vmatpush.msra.mxu0 %v629
    %708 = vmatpush.msra.mxu0 %v628
    %709 = vmatmul.f32.gmra.mxu0 %v671
    %v710 = vpop.f32.mrf.mxu0
    %v711 = vadd.f32 0.0, %v710
    %712 = vdwg.mxu0
    %713 = vmatpush.msra.mxu0 0.0
    %714 = vmatpush.msra.mxu0 0.0
    %715 = vmatpush.msra.mxu0 0.0
    %716 = vmatpush.msra.mxu0 0.0
    %717 = vmatpush.msra.mxu0 0.0
    %718 = vmatpush.msra.mxu0 0.0
    %719 = vmatpush.msra.mxu0 0.0
    %720 = vmatpush.msra.mxu0 0.0
    %721 = vmatpush.msra.mxu0 0.0
    %722 = vmatpush.msra.mxu0 0.0
    %723 = vmatpush.msra.mxu0 0.0
    %724 = vmatpush.msra.mxu0 0.0
    %725 = vmatpush.msra.mxu0 %v664
    %726 = vmatpush.msra.mxu0 %v663
    %727 = vmatpush.msra.mxu0 %v662
    %728 = vmatpush.msra.mxu0 %v661
    %729 = vmatmul.f32.gmra.mxu0 %v671
    %v730 = vpop.f32.mrf.mxu0
    %v731 = vadd.f32 0.0, %v730
    %732 = vdwg.mxu0
    %733 = vst [vmem:[#allocation2] sm:$0x3] %v348
    %734 = vst [vmem:[#allocation2 + $0x2] sm:$0x3] %v368
    %735 = vst [vmem:[#allocation2 + $0x4] sm:$0x3] %v388
    %736 = vst [vmem:[#allocation2 + $0x6] sm:$0x3] %v691
    %737 = vst [vmem:[#allocation2 + $0x8] sm:$0x3] %v711
    %738 = vst [vmem:[#allocation2 + $0xa] sm:$0x3] %v731
    // Predicated region
    $region54: #{tpu_custom_call.1} parent=1 // pred_check
      _
    $region55: #{tpu_custom_call.1} parent=1 // pred_check_branch
      %740 = sbr.rel (0) target = $region57
    $region56: #{tpu_custom_call.1} parent=1 // pred_region
      %742 = vsyncadd [#allocation3], 0
      %s743 = sshll.u32 [#allocation2], 4
      %s744 = int_to_ptr.vmem [resolvable:$true] %s743
      %s745 = sshll.u32 %s13, 4
      %s746 = int_to_ptr.hbm [resolvable:$true] %s745
      %751 = dma.vmem_to_hbm [thread:$0]  %s744, 256, %s746, [#allocation3], 128, 128, 8
    $region57: #{tpu_custom_call.1} parent=1 // pred_fallthru
      _
    // Predicated region
    $region58: #{tpu_custom_call.1} parent=1 // pred_check
      _
    $region59: #{tpu_custom_call.1} parent=1 // pred_check_branch
      %753 = sbr.rel (0) target = $region61
    $region60: #{tpu_custom_call.1} parent=1 // pred_region
      %755 = dma.done [#allocation3], 256
    $region61: #{tpu_custom_call.1} parent=1 // pred_fallthru
      _
    %756 = vsyncpa [#allocation3], 1

</llo_original>
